<compile_context>
chip_gen: v5e
topology: v5e:2x2
jax: 0.10.0
libtpu: 0.0.40
codegen_flags: <defaults>
</compile_context>

<pallas_src>
import jax
import jax.numpy as jnp
from jax.experimental import pallas as pl
from jax.experimental.pallas import tpu as pltpu

EPS = 1e-5                         # nn.GroupNorm default eps
_VMEM_LIMIT = 32 * 1024 * 1024     # conservative scoped-VMEM request (fits v5e..v7x)
_TILE_BUDGET = 2 * 1024 * 1024     # per-step VMEM budget used to pick row tiles


def _row_tile(h, bytes_per_row, budget=_TILE_BUDGET):
    """Largest divisor of `h` whose per-step footprint stays under `budget`."""
    best = 1
    for d in range(1, h + 1):
        if h % d == 0 and d * bytes_per_row <= budget:
            best = d
    return best


# --------------------------------------------------------------------------- #
# ConvTranspose2d(kernel=2, stride=2) with fused pixel-shuffle output layout   #
# --------------------------------------------------------------------------- #

def _make_deconv_kernel(th, wd, cin, cout):
    def kernel(x_ref, w0_ref, w1_ref, b_ref, o_ref):
        x = x_ref[0].reshape(th * wd, cin)                                   # bf16
        y0 = jnp.dot(x, w0_ref[...], preferred_element_type=jnp.float32) + b_ref[...]
        y1 = jnp.dot(x, w1_ref[...], preferred_element_type=jnp.float32) + b_ref[...]
        o_ref[0, :, 0, :, :] = y0.reshape(th, wd, 2 * cout).astype(o_ref.dtype)
        o_ref[0, :, 1, :, :] = y1.reshape(th, wd, 2 * cout).astype(o_ref.dtype)
    return kernel


def deconv2x2_stride2(x, w_kh0, w_kh1, b2):
    """x: (N, H, W, Cin) -> (N, 2H, 2W, Cout).

    w_kh0 / w_kh1: (Cin, 2*Cout) bf16 weight slabs for kh = 0 / 1, columns
    ordered (kw, cout).  b2: (1, 2*Cout) f32 bias tiled over kw.
    """
    N, H, W, Cin = x.shape
    cout = int(w_kh0.shape[1]) // 2
    x16 = x.astype(jnp.bfloat16)
    row_bytes = 2 * W * Cin * 2 + 2 * 2 * W * 2 * cout * 2 + 2 * W * 2 * cout * 4
    th = _row_tile(H, row_bytes)
    n_tiles = H // th
    out = pl.pallas_call(
        _make_deconv_kernel(th, W, Cin, cout),
        out_shape=jax.ShapeDtypeStruct((N, H, 2, W, 2 * cout), jnp.bfloat16),
        grid=(N, n_tiles),
        in_specs=[
            pl.BlockSpec((1, th, W, Cin), lambda n, t: (n, t, 0, 0)),
            pl.BlockSpec((Cin, 2 * cout), lambda n, t: (0, 0)),
            pl.BlockSpec((Cin, 2 * cout), lambda n, t: (0, 0)),
            pl.BlockSpec((1, 2 * cout), lambda n, t: (0, 0)),
        ],
        out_specs=pl.BlockSpec((1, th, 2, W, 2 * cout), lambda n, t: (n, t, 0, 0, 0)),
        compiler_params=pltpu.CompilerParams(
            dimension_semantics=("parallel", "parallel"),
            vmem_limit_bytes=_VMEM_LIMIT),
        cost_estimate=pl.CostEstimate(
            flops=2 * N * H * W * Cin * 4 * cout,
            transcendentals=0,
            bytes_accessed=N * (H * W * Cin + 4 * H * W * cout) * 2),
    )(x16, w_kh0, w_kh1, b2)
    # (N, H, 2, W, 2, Cout) -> (N, 2H, 2W, Cout): pure row-major reshape (free).
    return out.reshape(N, 2 * H, 2 * W, cout)


# --------------------------------------------------------------------------- #
# Conv2d(3x3, pad=1) + GroupNorm(C//2, C) + ReLU                               #
# --------------------------------------------------------------------------- #

def _make_conv_stats_kernel(n_in, th, wd, cins, cout, n_tiles):
    """Row-tiled 3x3 conv over `n_in` channel-concatenated inputs + GN stats."""
    def kernel(*refs):
        x_hbm = refs[:n_in]                             # padded inputs in HBM (pl.ANY)
        w_refs = refs[n_in:2 * n_in]                    # (9*Cin_k, Cout) bf16
        b_ref = refs[2 * n_in]                          # (1, Cout) f32
        y_ref = refs[2 * n_in + 1]                      # (1, th, wd, Cout) bf16
        st_ref = refs[2 * n_in + 2]                     # (1, 2, Cout) f32 accumulator
        bufs = refs[2 * n_in + 3:2 * n_in + 3 + n_in]   # (2, th+2, wd+2, Cin_k) bf16
        sem = refs[2 * n_in + 3 + n_in]                 # DMA sems (n_in, 2)

        n = pl.program_id(0)
        t = pl.program_id(1)
        slot = t % 2

        def start_fetch(tile, dst_slot):
            for k in range(n_in):
                pltpu.make_async_copy(
                    x_hbm[k].at[n, pl.ds(tile * th, th + 2)],
                    bufs[k].at[dst_slot],
                    sem.at[k, dst_slot],
                ).start()

        @pl.when(t == 0)
        def _():
            start_fetch(0, 0)                           # prime the pipeline

        for k in range(n_in):                           # wait for this tile's halo rows
            pltpu.make_async_copy(
                x_hbm[k].at[n, pl.ds(0, th + 2)],
                bufs[k].at[slot],
                sem.at[k, slot],
            ).wait()

        @pl.when(t + 1 < n_tiles)
        def _():
            start_fetch(t + 1, 1 - slot)                # prefetch next row tile

        @pl.when(t == 0)
        def _():
            st_ref[...] = jnp.zeros_like(st_ref)        # reset GN stats per image

        acc = jnp.zeros((th * wd, cout), jnp.float32) + b_ref[...]
        for k in range(n_in):                           # fused concat: per-input slabs
            xk = bufs[k][slot]                          # (th+2, wd+2, Cin_k) bf16
            ck = cins[k]
            for kh in range(3):                         # 9 shifted taps, no im2col in HBM
                for kw in range(3):
                    patch = xk[kh:kh + th, kw:kw + wd, :].reshape(th * wd, ck)
                    wtap = w_refs[k][(kh * 3 + kw) * ck:(kh * 3 + kw + 1) * ck, :]
                    acc = acc + jnp.dot(patch, wtap,
                                        preferred_element_type=jnp.float32)

        y_ref[0] = acc.reshape(th, wd, cout).astype(y_ref.dtype)
        st_ref[0, 0:1, :] += jnp.sum(acc, axis=0, keepdims=True)
        st_ref[0, 1:2, :] += jnp.sum(acc * acc, axis=0, keepdims=True)

    return kernel


def _norm_relu_kernel(y_ref, scale_ref, shift_ref, o_ref):
    y = y_ref[0].astype(jnp.float32)                    # (th, W, C)
    o_ref[0] = jnp.maximum(y * scale_ref[0] + shift_ref[0], 0.0).astype(o_ref.dtype)


def conv3x3_gn_relu(xs, ws, b, gamma, beta):
    """Fused Conv2d(3x3, pad=1, bias) + GroupNorm(C//2, C) + ReLU.

    xs : list of NHWC inputs whose channel concat is the conv input (the concat
         itself is fused into the kernel via per-input weight slabs `ws`).
    ws : list of (9*Cin_k, Cout) bf16 weight slabs, rows ordered (kh, kw, cin).
    """
    N, H, W, _ = xs[0].shape
    cins = tuple(int(x.shape[-1]) for x in xs)
    cout = int(ws[0].shape[1])
    n_in = len(xs)

    # +1 halo pad on each spatial side (single cheap XLA pass).
    # TODO(synk): could be removed by writing padded layouts from the producer kernels.
    xps = [jnp.pad(x.astype(jnp.bfloat16), ((0, 0), (1, 1), (1, 1), (0, 0))) for x in xs]

    row_bytes = (2 * sum(2 * (W + 2) * c for c in cins)   # double-buffered halo tiles
                 + 2 * 2 * W * cout                        # pipelined bf16 output block
                 + 4 * W * cout)                           # f32 accumulator
    th = _row_tile(H, row_bytes)
    n_tiles = H // th

    flops = 2 * N * H * W * cout * 9 * sum(cins)
    bytes_accessed = (N * sum((H + 2) * (W + 2) * c * 2 for c in cins)
                      + sum(9 * c * cout * 2 for c in cins)
                      + N * H * W * cout * 2 + N * 2 * cout * 4)

    y, stats = pl.pallas_call(
        _make_conv_stats_kernel(n_in, th, W, cins, cout, n_tiles),
        out_shape=(jax.ShapeDtypeStruct((N, H, W, cout), jnp.bfloat16),
                   jax.ShapeDtypeStruct((N, 2, cout), jnp.float32)),
        grid_spec=pltpu.PrefetchScalarGridSpec(
            num_scalar_prefetch=0,
            grid=(N, n_tiles),
            in_specs=([pl.BlockSpec(memory_space=pl.ANY)] * n_in
                      + [pl.BlockSpec((9 * c, cout), lambda n, t: (0, 0)) for c in cins]
                      + [pl.BlockSpec((1, cout), lambda n, t: (0, 0))]),
            out_specs=(pl.BlockSpec((1, th, W, cout), lambda n, t: (n, t, 0, 0)),
                       pl.BlockSpec((1, 2, cout), lambda n, t: (n, 0, 0))),
            scratch_shapes=([pltpu.VMEM((2, th + 2, W + 2, c), jnp.bfloat16) for c in cins]
                            + [pltpu.SemaphoreType.DMA((n_in, 2))])),
        compiler_params=pltpu.CompilerParams(
            dimension_semantics=("parallel", "arbitrary"),
            vmem_limit_bytes=_VMEM_LIMIT),
        cost_estimate=pl.CostEstimate(flops=int(flops), transcendentals=0,
                                      bytes_accessed=int(bytes_accessed)),
    )(*xps, *ws, b)

    # GroupNorm finalize: tiny per-(image, channel) math on the accumulated stats.
    s1, s2 = stats[:, 0, :], stats[:, 1, :]
    gs1 = s1.reshape(N, cout // 2, 2).sum(-1)            # group size 2: pair-sum
    gs2 = s2.reshape(N, cout // 2, 2).sum(-1)
    cnt = 2.0 * float(H * W)
    gmean = gs1 / cnt
    gvar = jnp.maximum(gs2 / cnt - gmean * gmean, 0.0)   # guard tiny negative variance
    ginv = jax.lax.rsqrt(gvar + EPS)
    mean_c = jnp.repeat(gmean, 2, axis=1)
    inv_c = jnp.repeat(ginv, 2, axis=1)
    scale = (inv_c * gamma[None, :]).reshape(N, 1, cout).astype(jnp.float32)
    shift = (beta[None, :] - mean_c * inv_c * gamma[None, :]).reshape(N, 1, cout).astype(jnp.float32)

    out = pl.pallas_call(
        _norm_relu_kernel,
        out_shape=jax.ShapeDtypeStruct((N, H, W, cout), jnp.bfloat16),
        grid=(N, n_tiles),
        in_specs=[pl.BlockSpec((1, th, W, cout), lambda n, t: (n, t, 0, 0)),
                  pl.BlockSpec((1, 1, cout), lambda n, t: (n, 0, 0)),
                  pl.BlockSpec((1, 1, cout), lambda n, t: (n, 0, 0))],
        out_specs=pl.BlockSpec((1, th, W, cout), lambda n, t: (n, t, 0, 0)),
        compiler_params=pltpu.CompilerParams(
            dimension_semantics=("parallel", "parallel"),
            vmem_limit_bytes=_VMEM_LIMIT),
        cost_estimate=pl.CostEstimate(flops=2 * N * H * W * cout, transcendentals=0,
                                      bytes_accessed=N * H * W * cout * 4),
    )(y, scale, shift)
    return out


# ------------------------------- parameters -------------------------------- #

def init_decoder_params(key, feature_maps, levels):
    """Random parameters, kept both as f32 reference tensors and Pallas layouts.

    NOTE: PyTorch's ConvTranspose2d native weight layout is (Cin, Cout, kH, kW);
    porting real weights requires permuting to (Cin, kH, kW, Cout) before the
    per-kh split below.  Conv2d weights (Cout, Cin, kH, kW) must be permuted to
    HWIO (kH, kW, Cin, Cout) before flattening to (9*Cin, Cout).
    """
    params = []
    for i in range(levels):
        cin_up = 2 ** (levels - i) * feature_maps       # deconv input channels
        cout = 2 ** (levels - i - 1) * feature_maps     # block output channels
        cskip = cout                                    # skip-connection channels
        key, k1, k2, k3, k4, k5, k6 = jax.random.split(key, 7)
        up_w4 = 0.1 * jax.random.normal(k1, (cin_up, 2, 2, cout), jnp.float32)
        up_b = 0.1 * jax.random.normal(k2, (cout,), jnp.float32)
        c1_w4 = 0.1 * jax.random.normal(k3, (3, 3, cskip + cout, cout), jnp.float32)
        c1_b = 0.1 * jax.random.normal(k4, (cout,), jnp.float32)
        c2_w4 = 0.1 * jax.random.normal(k5, (3, 3, cout, cout), jnp.float32)
        c2_b = 0.1 * jax.random.normal(k6, (cout,), jnp.float32)
        ones = jnp.ones((cout,), jnp.float32)
        zeros = jnp.zeros((cout,), jnp.float32)
        params.append({
            # f32 originals (used by the pure-JAX reference check)
            "up_w4": up_w4, "up_b": up_b,
            "c1_w4": c1_w4, "c1_b": c1_b, "c1_g": ones, "c1_be": zeros,
            "c2_w4": c2_w4, "c2_b": c2_b, "c2_g": ones, "c2_be": zeros,
            # Pallas layouts: bf16 MXU operands, f32 biases
            "up_w0": up_w4[:, 0].reshape(cin_up, 2 * cout).astype(jnp.bfloat16),
            "up_w1": up_w4[:, 1].reshape(cin_up, 2 * cout).astype(jnp.bfloat16),
            "up_b2": jnp.tile(up_b, 2).reshape(1, 2 * cout),
            "c1_wa": c1_w4[:, :, :cskip, :].reshape(9 * cskip, cout).astype(jnp.bfloat16),
            "c1_wb": c1_w4[:, :, cskip:, :].reshape(9 * cout, cout).astype(jnp.bfloat16),
            "c1_b2": c1_b.reshape(1, cout),
            "c2_wf": c2_w4.reshape(9 * cout, cout).astype(jnp.bfloat16),
            "c2_b2": c2_b.reshape(1, cout),
        })
    return params


# --------------------------- decoder forward pass --------------------------- #

def dat_unet_decoder_forward(inputs, encoder_outputs, params, lambdas, levels):
    enc = list(reversed(encoder_outputs))                 # encoder_outputs.reverse()
    decoder_outputs = []
    reverse_outputs = []
    outputs = inputs
    for i in range(levels):
        p = params[i]
        up = deconv2x2_stride2(outputs, p["up_w0"], p["up_w1"], p["up_b2"])
        # skip_connections=True: concat([enc[i], up], channel) fused into conv1
        outputs = conv3x3_gn_relu([enc[i], up], [p["c1_wa"], p["c1_wb"]],
                                  p["c1_b2"], p["c1_g"], p["c1_be"])
        outputs = conv3x3_gn_relu([outputs], [p["c2_wf"]],
                                  p["c2_b2"], p["c2_g"], p["c2_be"])
        decoder_outputs.append(outputs)
        if lambdas[levels + i + 1] > 0:
            reverse_outputs.append(outputs)               # ReverseLayerF.forward == identity
        else:
            reverse_outputs.append(None)
    # TODO(synk): self.output (1x1 conv) is defined in __init__ but never applied in forward().
    return enc, reverse_outputs, outputs


# ------------------------- pure-JAX f32 reference --------------------------- #

def _ref_conv_gn_relu(x, w4, b, gamma, beta):
    y = jax.lax.conv_general_dilated(
        x, w4, window_strides=(1, 1), padding="SAME",
        dimension_numbers=("NHWC", "HWIO", "NHWC")) + b[None, None, None, :]
    N, H, W, C = y.shape
    g = y.reshape(N, H, W, C // 2, 2)
    mean = jnp.mean(g, axis=(1, 2, 4), keepdims=True)
    var = jnp.var(g, axis=(1, 2, 4), keepdims=True)
    yn = ((g - mean) * jax.lax.rsqrt(var + EPS)).reshape(N, H, W, C)
    return jnp.maximum(yn * gamma[None, None, None, :] + beta[None, None, None, :], 0.0)


def _ref_forward(inputs, encoder_outputs, params, levels):
    enc = list(reversed(encoder_outputs))
    outputs = inputs
    for i in range(levels):
        p = params[i]
        N, H, W, _ = outputs.shape
        w4 = p["up_w4"]
        cout = w4.shape[-1]
        up = jnp.einsum("nhwc,cijo->nhiwjo", outputs, w4).reshape(
            N, 2 * H, 2 * W, cout) + p["up_b"][None, None, None, :]
        x = jnp.concatenate([enc[i], up], axis=-1)
        x = _ref_conv_gn_relu(x, p["c1_w4"], p["c1_b"], p["c1_g"], p["c1_be"])
        x = _ref_conv_gn_relu(x, p["c2_w4"], p["c2_b"], p["c2_g"], p["c2_be"])
        outputs = x
    return outputs


# ---------------------------------- main ------------------------------------ #

if __name__ == "__main__":
    key = jax.random.PRNGKey(0)
    feature_maps, levels = 4, 2
    N, Hb, Wb = 2, 4, 4                        # bottleneck spatial size
    lambdas = [0.0, 0.0, 0.0, 1.0, 0.0]        # indices levels+i+1 used -> [3]=1, [4]=0

    key, ki, ke1, ke2, kp = jax.random.split(key, 5)
    inputs = jax.random.normal(ki, (N, Hb, Wb, 2 ** levels * feature_maps), jnp.float32)
    enc_shallow = jax.random.normal(ke1, (N, 4 * Hb, 4 * Wb, feature_maps), jnp.float32)
    enc_deep = jax.random.normal(ke2, (N, 2 * Hb, 2 * Wb, 2 * feature_maps), jnp.float32)
    encoder_outputs = [enc_shallow, enc_deep]

    params = init_decoder_params(kp, feature_maps, levels)

    enc_rev, rev_outs, outputs = dat_unet_decoder_forward(
        inputs, encoder_outputs, params, lambdas, levels)
    outputs = jax.block_until_ready(outputs)

    assert outputs.shape == (N, 4 * Hb, 4 * Wb, feature_maps)
    assert rev_outs[0] is not None and rev_outs[1] is None

    # Numerical sanity check against a pure-JAX f32 reference (bf16 tolerance).
    ref = _ref_forward(inputs, encoder_outputs, params, levels)
    out_f32 = outputs.astype(jnp.float32)
    rel_err = float(jnp.linalg.norm(out_f32 - ref) / (jnp.linalg.norm(ref) + 1e-12))
    assert rel_err < 0.2, f"relative L2 error vs reference too large: {rel_err}"

    print("KERNEL_OK")
</pallas_src>

<mosaic_0001>
module attributes {stable_mosaic.version = 11 : i64} {
  func.func @kernel(%arg0: i32, %arg1: i32, %arg2: memref<1x4x4x16xbf16, #tpu.memory_space<vmem>>, %arg3: memref<16x16xbf16, #tpu.memory_space<vmem>>, %arg4: memref<16x16xbf16, #tpu.memory_space<vmem>>, %arg5: memref<1x16xf32, #tpu.memory_space<vmem>>, %arg6: memref<1x4x2x4x16xbf16, #tpu.memory_space<vmem>>) attributes {dimension_semantics = [#tpu.dimension_semantics<parallel>, #tpu.dimension_semantics<parallel>], iteration_bounds = array<i64: 2, 1>, scalar_prefetch = 0 : i64, scratch_operands = 0 : i64, tpu.core_type = #tpu.core_type<tc>, window_params = [{transform_indices = @transform_0, window_bounds = array<i64: 1, 4, 4, 16>}, {pipeline_mode = #tpu.pipeline_mode<synchronous>, transform_indices = @transform_1, window_bounds = array<i64: 16, 16>}, {pipeline_mode = #tpu.pipeline_mode<synchronous>, transform_indices = @transform_2, window_bounds = array<i64: 16, 16>}, {pipeline_mode = #tpu.pipeline_mode<synchronous>, transform_indices = @transform_3, window_bounds = array<i64: 1, 16>}, {transform_indices = @transform_4, window_bounds = array<i64: 1, 4, 2, 4, 16>}]} {
    %c0 = arith.constant 0 : index
    %c0_0 = arith.constant 0 : index
    %c0_1 = arith.constant 0 : index
    %c0_2 = arith.constant 0 : index
    %0 = vector.load %arg2[%c0, %c0_0, %c0_1, %c0_2] : memref<1x4x4x16xbf16, #tpu.memory_space<vmem>>, vector<1x4x4x16xbf16>
    %1 = vector.shape_cast %0 : vector<1x4x4x16xbf16> to vector<4x4x16xbf16>
    %2 = vector.shape_cast %1 : vector<4x4x16xbf16> to vector<16x16xbf16>
    %c0_3 = arith.constant 0 : index
    %c0_4 = arith.constant 0 : index
    %3 = vector.load %arg3[%c0_3, %c0_4] : memref<16x16xbf16, #tpu.memory_space<vmem>>, vector<16x16xbf16>
    %cst = arith.constant dense<0.000000e+00> : vector<16x16xf32>
    %4 = tpu.matmul %2, %3, %cst {dimension_numbers = #tpu.dot_dimension_numbers<[1], [0], [0], [1], [0, 0, 1, 1], [], []>} : vector<16x16xbf16>, vector<16x16xbf16>, vector<16x16xf32> -> vector<16x16xf32>
    %c0_5 = arith.constant 0 : index
    %c0_6 = arith.constant 0 : index
    %5 = vector.load %arg5[%c0_5, %c0_6] : memref<1x16xf32, #tpu.memory_space<vmem>>, vector<1x16xf32>
    %6 = vector.broadcast %5 : vector<1x16xf32> to vector<16x16xf32>
    %7 = arith.addf %4, %6 : vector<16x16xf32>
    %c0_7 = arith.constant 0 : index
    %c0_8 = arith.constant 0 : index
    %8 = vector.load %arg4[%c0_7, %c0_8] : memref<16x16xbf16, #tpu.memory_space<vmem>>, vector<16x16xbf16>
    %cst_9 = arith.constant dense<0.000000e+00> : vector<16x16xf32>
    %9 = tpu.matmul %2, %8, %cst_9 {dimension_numbers = #tpu.dot_dimension_numbers<[1], [0], [0], [1], [0, 0, 1, 1], [], []>} : vector<16x16xbf16>, vector<16x16xbf16>, vector<16x16xf32> -> vector<16x16xf32>
    %c0_10 = arith.constant 0 : index
    %c0_11 = arith.constant 0 : index
    %10 = vector.load %arg5[%c0_10, %c0_11] : memref<1x16xf32, #tpu.memory_space<vmem>>, vector<1x16xf32>
    %11 = vector.broadcast %10 : vector<1x16xf32> to vector<16x16xf32>
    %12 = arith.addf %9, %11 : vector<16x16xf32>
    %13 = vector.shape_cast %7 : vector<16x16xf32> to vector<4x4x16xf32>
    %14 = arith.truncf %13 : vector<4x4x16xf32> to vector<4x4x16xbf16>
    %c0_12 = arith.constant 0 : index
    %c0_13 = arith.constant 0 : index
    %c0_14 = arith.constant 0 : index
    %c0_15 = arith.constant 0 : index
    %c0_16 = arith.constant 0 : index
    %15 = vector.load %arg6[%c0_12, %c0_13, %c0_14, %c0_15, %c0_16] : memref<1x4x2x4x16xbf16, #tpu.memory_space<vmem>>, vector<1x4x1x4x16xbf16>
    %16 = vector.shape_cast %15 : vector<1x4x1x4x16xbf16> to vector<4x4x16xbf16>
    %17 = vector.shape_cast %14 : vector<4x4x16xbf16> to vector<1x4x1x4x16xbf16>
    tpu.vector_store %arg6[%c0_12, %c0_13, %c0_14, %c0_15, %c0_16], %17 {strides = array<i32>} : memref<1x4x2x4x16xbf16, #tpu.memory_space<vmem>>, vector<1x4x1x4x16xbf16>,
    %18 = vector.shape_cast %12 : vector<16x16xf32> to vector<4x4x16xf32>
    %19 = arith.truncf %18 : vector<4x4x16xf32> to vector<4x4x16xbf16>
    %c0_17 = arith.constant 0 : index
    %c0_18 = arith.constant 0 : index
    %c1 = arith.constant 1 : index
    %c0_19 = arith.constant 0 : index
    %c0_20 = arith.constant 0 : index
    %20 = vector.load %arg6[%c0_17, %c0_18, %c1, %c0_19, %c0_20] : memref<1x4x2x4x16xbf16, #tpu.memory_space<vmem>>, vector<1x4x1x4x16xbf16>
    %21 = vector.shape_cast %20 : vector<1x4x1x4x16xbf16> to vector<4x4x16xbf16>
    %22 = vector.shape_cast %19 : vector<4x4x16xbf16> to vector<1x4x1x4x16xbf16>
    tpu.vector_store %arg6[%c0_17, %c0_18, %c1, %c0_19, %c0_20], %22 {strides = array<i32>} : memref<1x4x2x4x16xbf16, #tpu.memory_space<vmem>>, vector<1x4x1x4x16xbf16>,
    return
  }
  func.func @transform_0(%arg0: i32, %arg1: i32) -> (i32, i32, i32, i32) {
    %c0_i32 = arith.constant 0 : i32
    %c0_i32_0 = arith.constant 0 : i32
    %c0_i32_1 = arith.constant 0 : i32
    return %arg0, %arg1, %c0_i32, %c0_i32_0 : i32, i32, i32, i32
  }
  func.func @transform_1(%arg0: i32, %arg1: i32) -> (i32, i32) {
    %c0_i32 = arith.constant 0 : i32
    %c0_i32_0 = arith.constant 0 : i32
    %c0_i32_1 = arith.constant 0 : i32
    return %c0_i32, %c0_i32_0 : i32, i32
  }
  func.func @transform_2(%arg0: i32, %arg1: i32) -> (i32, i32) {
    %c0_i32 = arith.constant 0 : i32
    %c0_i32_0 = arith.constant 0 : i32
    %c0_i32_1 = arith.constant 0 : i32
    return %c0_i32, %c0_i32_0 : i32, i32
  }
  func.func @transform_3(%arg0: i32, %arg1: i32) -> (i32, i32) {
    %c0_i32 = arith.constant 0 : i32
    %c0_i32_0 = arith.constant 0 : i32
    %c0_i32_1 = arith.constant 0 : i32
    return %c0_i32, %c0_i32_0 : i32, i32
  }
  func.func @transform_4(%arg0: i32, %arg1: i32) -> (i32, i32, i32, i32, i32) {
    %c0_i32 = arith.constant 0 : i32
    %c0_i32_0 = arith.constant 0 : i32
    %c0_i32_1 = arith.constant 0 : i32
    %c0_i32_2 = arith.constant 0 : i32
    return %arg0, %arg1, %c0_i32, %c0_i32_0, %c0_i32_1 : i32, i32, i32, i32, i32
  }
}

</mosaic_0001>

<llo_original>
// kernel: tpu_custom_call.1
$region0: #{tpu_custom_call.1}
  #allocation0 [shape = 'u32[]', space=smem, size = 0x4, offset = 0x4, fixed_abs, tag = 'smem constant byte address 0x4 - core index']
  #allocation1 [shape = 'u32[72,128]{1,0:T(1,128)}', space=vmem, size = 0x9000, scoped, tag = 'internal scratch']
  %s0 = inlined_call_operand.hbm [shape: bf16[2,4,4,16], index: 0, kind: input, shape index: {}]
  %s1 = inlined_call_operand.hbm [shape: bf16[16,16], index: 1, kind: input, shape index: {}]
  %s2 = inlined_call_operand.hbm [shape: bf16[16,16], index: 2, kind: input, shape index: {}]
  %s3 = inlined_call_operand.vmem [shape: f32[1,16], index: 3, kind: input, shape index: {}]
  %s4 = inlined_call_operand.hbm [shape: bf16[2,4,2,4,16], index: 4, kind: output, shape index: {}]
  %s5 = sld [smem:[#allocation0]]
  $region61: #{tpu_custom_call.1} parent=0
    _
  %s7 = ssub.s32 1, %s5
  %s8 = scalar_select 0, %s7, %s5
  $region1: #{tpu_custom_call.1} parent=0
    #allocation2 [shape = 'u8[8192]{0}', space=vmem, size = 0x2000, scoped, tag = 'input window, operand 0']
    #allocation3 [shape = 's32[2]{0}', space=sflag, size = 0x8, scoped, tag = 'scoped memory for tpu_custom_call.1']
    #allocation4 [shape = 's32[2]{0}', space=sflag, size = 0x8, scoped, tag = 'scoped memory for tpu_custom_call.1']
    #allocation5 [shape = 'u8[4096]{0}', space=vmem, size = 0x1000, scoped, tag = 'input window, operand 1, single buffered']
    #allocation6 [shape = 's32[1]{0}', space=sflag, size = 0x4, scoped, tag = 'scoped memory for tpu_custom_call.1']
    #allocation7 [shape = 'u8[4096]{0}', space=vmem, size = 0x1000, scoped, tag = 'input window, operand 2, single buffered']
    #allocation8 [shape = 'u8[16384]{0}', space=vmem, size = 0x4000, scoped, tag = 'output window, operand 0']
    %9 = vsyncpa [#allocation3], 0
    %s10 = scalar_lea.sflag [#allocation3], 1
    %11 = vsyncpa %s10, 0
    %12 = vsyncpa [#allocation6], 0
    %13 = vsyncpa [#allocation4], 0
    %s14 = scalar_lea.sflag [#allocation4], 1
    %15 = vsyncpa %s14, 0
    loop: start=0, step=1, limit=4
    $region2: #{tpu_custom_call.1} parent=1 // loop_pre_header
      _
    $region3: #{tpu_custom_call.1} parent=1 // loop_header
      %s17 = sphi 0, %s21
      %p18 = scmp.ge.s32.totalorder %s17, 4
      %s24 = sphi 0, %s36
      %s25 = sphi 0, %s32
      %s26 = sphi 0, %s24
      %s27 = sphi 0, %s25
      %s28 = sphi 0, %s26
      %s29 = sphi 0, %s27
      %s41 = sphi 0, %s43
      %s44 = sphi 0, %s41
      %s45 = sphi 0, %s44
      %s61 = sphi 0, %s45
      %s65 = sphi 0, %s65
      %s67 = sphi 0, %s65
      %s68 = sphi 0, %s67
      %s82 = sphi 0, %s68
      %s86 = sphi 0, %s86
      %s88 = sphi 0, %s86
      %s89 = sphi 0, %s88
      %s103 = sphi 0, %s89
      %s107 = sphi 0, %s107
      %s109 = sphi 0, %s107
      %s110 = sphi 0, %s109
      %s124 = sphi 0, %s110
      %s132 = sphi 0, %s134
      %s135 = sphi 0, %s132
      %s136 = sphi 0, %s135
      %s152 = sphi 0, %s136
    $region4: #{tpu_custom_call.1} parent=1 // loop_header_branch
      %20 = sbr.rel (%p18) target = $region8
    $region5: #{tpu_custom_call.1} parent=1 // loop_body
      %s22 = ssub.s32 %s17, 1
      %s23 = ssub.s32 %s17, 2
      %s30 = sadd.s32 1, %s25
      %p31 = scmp.ge.s32.totalorder %s30, 1
      %s32 = scalar_select %p31, 0, %s30
      %s33 = sadd.s32 1, %s24
      %s34 = scalar_select %p31, %s33, %s24
      %p35 = scmp.ge.s32.totalorder %s34, 2
      %s36 = scalar_select %p35, 0, %s34
      %s37 = ssub.s32 %s24, %s36
      %s38 = ssub.s32 %s25, %s32
      %s39 = sor.u32 %s37, %s38
      %p40 = scmp.eq.s32.totalorder %s39, 0
      %s42 = sadd.s32 %s41, 1
      %s43 = scalar_select %p40, %s41, %s42
      %p46 = pneg %p40
      %p47 = scmp.eq.s32.totalorder %s17, 1
      %p48 = por %p46, %p47
      %p49 = scmp.ne.s32.totalorder %s41, %s44
      %p50 = scmp.eq.s32.totalorder %s17, 0
      %p51 = por %p49, %p50
      %p52 = scmp.ne.s32.totalorder %s41, %s44
      %p53 = scmp.eq.s32.totalorder %s22, 1
      %p54 = por %p52, %p53
      %p55 = scmp.ne.s32.totalorder %s44, %s45
      %p56 = scmp.eq.s32.totalorder %s22, 0
      %p57 = por %p55, %p56
      %p58 = scmp.ne.s32.totalorder %s44, %s45
      %p59 = scmp.eq.s32.totalorder %s23, 1
      %p60 = por %p58, %p59
      %p62 = scmp.ne.s32.totalorder %s45, %s61
      %p63 = scmp.eq.s32.totalorder %s23, 0
      %p64 = por %p62, %p63
      %s66 = sadd.s32 %s65, 1
      %p69 = scmp.eq.s32.totalorder %s17, 1
      %p70 = scmp.ne.s32.totalorder %s65, %s67
      %p71 = scmp.eq.s32.totalorder %s17, 0
      %p72 = por %p70, %p71
      %p73 = scmp.ne.s32.totalorder %s65, %s67
      %p74 = scmp.eq.s32.totalorder %s22, 1
      %p75 = por %p73, %p74
      %p76 = scmp.ne.s32.totalorder %s67, %s68
      %p77 = scmp.eq.s32.totalorder %s22, 0
      %p78 = por %p76, %p77
      %p79 = scmp.ne.s32.totalorder %s67, %s68
      %p80 = scmp.eq.s32.totalorder %s23, 1
      %p81 = por %p79, %p80
      %p83 = scmp.ne.s32.totalorder %s68, %s82
      %p84 = scmp.eq.s32.totalorder %s23, 0
      %p85 = por %p83, %p84
      %s87 = sadd.s32 %s86, 1
      %p90 = scmp.eq.s32.totalorder %s17, 1
      %p91 = scmp.ne.s32.totalorder %s86, %s88
      %p92 = scmp.eq.s32.totalorder %s17, 0
      %p93 = por %p91, %p92
      %p94 = scmp.ne.s32.totalorder %s86, %s88
      %p95 = scmp.eq.s32.totalorder %s22, 1
      %p96 = por %p94, %p95
      %p97 = scmp.ne.s32.totalorder %s88, %s89
      %p98 = scmp.eq.s32.totalorder %s22, 0
      %p99 = por %p97, %p98
      %p100 = scmp.ne.s32.totalorder %s88, %s89
      %p101 = scmp.eq.s32.totalorder %s23, 1
      %p102 = por %p100, %p101
      %p104 = scmp.ne.s32.totalorder %s89, %s103
      %p105 = scmp.eq.s32.totalorder %s23, 0
      %p106 = por %p104, %p105
      %s108 = sadd.s32 %s107, 1
      %p111 = scmp.eq.s32.totalorder %s17, 1
      %p112 = scmp.ne.s32.totalorder %s107, %s109
      %p113 = scmp.eq.s32.totalorder %s17, 0
      %p114 = por %p112, %p113
      %p115 = scmp.ne.s32.totalorder %s107, %s109
      %p116 = scmp.eq.s32.totalorder %s22, 1
      %p117 = por %p115, %p116
      %p118 = scmp.ne.s32.totalorder %s109, %s110
      %p119 = scmp.eq.s32.totalorder %s22, 0
      %p120 = por %p118, %p119
      %p121 = scmp.ne.s32.totalorder %s109, %s110
      %p122 = scmp.eq.s32.totalorder %s23, 1
      %p123 = por %p121, %p122
      %p125 = scmp.ne.s32.totalorder %s110, %s124
      %p126 = scmp.eq.s32.totalorder %s23, 0
      %p127 = por %p125, %p126
      %s128 = ssub.s32 %s24, %s36
      %s129 = ssub.s32 %s25, %s32
      %s130 = sor.u32 %s128, %s129
      %p131 = scmp.eq.s32.totalorder %s130, 0
      %s133 = sadd.s32 %s132, 1
      %s134 = scalar_select %p131, %s132, %s133
      %p137 = pneg %p131
      %p138 = scmp.eq.s32.totalorder %s17, 1
      %p139 = por %p137, %p138
      %p140 = scmp.ne.s32.totalorder %s132, %s135
      %p141 = scmp.eq.s32.totalorder %s17, 0
      %p142 = por %p140, %p141
      %p143 = scmp.ne.s32.totalorder %s132, %s135
      %p144 = scmp.eq.s32.totalorder %s22, 1
      %p145 = por %p143, %p144
      %p146 = scmp.ne.s32.totalorder %s135, %s136
      %p147 = scmp.eq.s32.totalorder %s22, 0
      %p148 = por %p146, %p147
      %p149 = scmp.ne.s32.totalorder %s135, %s136
      %p150 = scmp.eq.s32.totalorder %s23, 1
      %p151 = por %p149, %p150
      %p153 = scmp.ne.s32.totalorder %s136, %s152
      %p154 = scmp.eq.s32.totalorder %s23, 0
      %p155 = por %p153, %p154
      %p156 = scmp.le.s32.totalorder 1, %s17
      %p157 = scmp.lt.s32.totalorder %s17, 3
      %p158 = pnand %p156, %p157
      %p159 = pneg %p158
      // Predicated region
      $region9: #{tpu_custom_call.1} parent=5 // pred_check
        _
      $region10: #{tpu_custom_call.1} parent=5 // pred_check_branch
        %161 = sbr.rel (%p158) target = $region12
      $region11: #{tpu_custom_call.1} parent=5 // pred_region
        %s162 = ssub.s32 %s17, 1
        // Predicated region
        $region13: #{tpu_custom_call.1} parent=11 // pred_check
          %p163 = pneg %p78
        $region14: #{tpu_custom_call.1} parent=11 // pred_check_branch
          %165 = sbr.rel (%p163) target = $region16
        $region15: #{tpu_custom_call.1} parent=11 // pred_region
          %167 = vsyncadd [#allocation6], 0
          %s168 = sshll.u32 %s1, 4
          %s169 = int_to_ptr.hbm [resolvable:$true] %s168
          %s170 = sshll.u32 [#allocation5], 4
          %s171 = int_to_ptr.vmem [resolvable:$true] %s170
          %176 = dma.hbm_to_vmem [thread:$0]  %s169, 128, %s171, [#allocation6], 64, 64, 4
        $region16: #{tpu_custom_call.1} parent=11 // pred_fallthru
          _
        // Predicated region
        $region17: #{tpu_custom_call.1} parent=11 // pred_check
          %p177 = pneg %p99
        $region18: #{tpu_custom_call.1} parent=11 // pred_check_branch
          %179 = sbr.rel (%p177) target = $region20
        $region19: #{tpu_custom_call.1} parent=11 // pred_region
          %181 = vsyncadd [#allocation6], 0
          %s182 = sshll.u32 %s2, 4
          %s183 = int_to_ptr.hbm [resolvable:$true] %s182
          %s184 = sshll.u32 [#allocation7], 4
          %s185 = int_to_ptr.vmem [resolvable:$true] %s184
          %190 = dma.hbm_to_vmem [thread:$0]  %s183, 128, %s185, [#allocation6], 64, 64, 4
        $region20: #{tpu_custom_call.1} parent=11 // pred_fallthru
          _
        // Predicated region
        $region21: #{tpu_custom_call.1} parent=11 // pred_check
          %p191 = pneg %p120
        $region22: #{tpu_custom_call.1} parent=11 // pred_check_branch
          %193 = sbr.rel (%p191) target = $region24
        $region23: #{tpu_custom_call.1} parent=11 // pred_region
          _
        $region24: #{tpu_custom_call.1} parent=11 // pred_fallthru
          _
      $region12: #{tpu_custom_call.1} parent=5 // pred_fallthru
        _
      %p194 = scmp.lt.s32.totalorder %s17, 2
      // Predicated region
      $region25: #{tpu_custom_call.1} parent=5 // pred_check
        %p195 = pneg %p194
      $region26: #{tpu_custom_call.1} parent=5 // pred_check_branch
        %197 = sbr.rel (%p195) target = $region28
      $region27: #{tpu_custom_call.1} parent=5 // pred_region
        // Predicated region
        $region29: #{tpu_custom_call.1} parent=27 // pred_check
          %p198 = pneg %p51
        $region30: #{tpu_custom_call.1} parent=27 // pred_check_branch
          %200 = sbr.rel (%p198) target = $region32
        $region31: #{tpu_custom_call.1} parent=27 // pred_region
          %s201 = sand.u32 %s41, 1
          %s202 = scalar_lea.sflag [#allocation3], %s201
          %s203 = sand.u32 %s41, 1
          %s204 = smul.addr %s203, 8
          %s205 = scalar_lea.vmem [#allocation2], %s204
          %s206 = smul.u32 4, %s25
          %208 = vsyncadd %s202, 0
          %s209 = smul.addr %s24, 4
          %s210 = sadd.s32 %s206, %s209
          %s211 = smul.addr %s210, 2
          %s212 = scalar_lea.hbm %s0, %s211
          %s213 = sshll.u32 %s212, 4
          %s214 = int_to_ptr.hbm [resolvable:$true] %s213
          %s215 = sshll.u32 %s205, 4
          %s216 = int_to_ptr.vmem [resolvable:$true] %s215
          %221 = dma.hbm_to_vmem [thread:$0]  %s214, 128, %s216, %s202, 32, 32, 2
        $region32: #{tpu_custom_call.1} parent=27 // pred_fallthru
          _
      $region28: #{tpu_custom_call.1} parent=5 // pred_fallthru
        _
      %p222 = scmp.le.s32.totalorder 1, %s17
      %p223 = scmp.lt.s32.totalorder %s17, 3
      %p224 = pnand %p222, %p223
      %p225 = pneg %p224
      // Predicated region
      $region33: #{tpu_custom_call.1} parent=5 // pred_check
        _
      $region34: #{tpu_custom_call.1} parent=5 // pred_check_branch
        %227 = sbr.rel (%p224) target = $region36
      $region35: #{tpu_custom_call.1} parent=5 // pred_region
        %s228 = ssub.s32 %s17, 1
        %s229 = sand.u32 %s44, 1
        %s230 = scalar_lea.sflag [#allocation3], %s229
        %s231 = sand.u32 %s44, 1
        %s232 = smul.addr %s231, 8
        %s233 = scalar_lea.vmem [#allocation2], %s232
        // Predicated region
        $region37: #{tpu_custom_call.1} parent=35 // pred_check
          %p234 = pneg %p57
        $region38: #{tpu_custom_call.1} parent=35 // pred_check_branch
          %236 = sbr.rel (%p234) target = $region40
        $region39: #{tpu_custom_call.1} parent=35 // pred_region
          %238 = dma.done %s230, 128
        $region40: #{tpu_custom_call.1} parent=35 // pred_fallthru
          _
        // Predicated region
        $region41: #{tpu_custom_call.1} parent=35 // pred_check
          %p239 = pneg %p78
        $region42: #{tpu_custom_call.1} parent=35 // pred_check_branch
          %241 = sbr.rel (%p239) target = $region44
        $region43: #{tpu_custom_call.1} parent=35 // pred_region
          %243 = dma.done [#allocation6], 128
        $region44: #{tpu_custom_call.1} parent=35 // pred_fallthru
          _
        // Predicated region
        $region45: #{tpu_custom_call.1} parent=35 // pred_check
          %p244 = pneg %p99
        $region46: #{tpu_custom_call.1} parent=35 // pred_check_branch
          %246 = sbr.rel (%p244) target = $region48
        $region47: #{tpu_custom_call.1} parent=35 // pred_region
          %248 = dma.done [#allocation6], 128
        $region48: #{tpu_custom_call.1} parent=35 // pred_fallthru
          _
        %s249 = sand.u32 %s44, 1
        %s250 = scalar_lea.sflag [#allocation3], %s249
        %s251 = sand.u32 %s44, 1
        %s252 = smul.addr %s251, 8
        %s253 = scalar_lea.vmem [#allocation2], %s252
        %p254 = pneg %p57
        %p255 = pneg %p54
        %p256 = pneg %p78
        %p257 = pneg %p75
        %p258 = pneg %p99
        %p259 = pneg %p96
        %p260 = pneg %p120
        %p261 = pneg %p117
        %p262 = pneg %p148
        %p263 = pneg %p145
        %s264 = sand.u32 %s135, 1
        %s265 = scalar_lea.sflag [#allocation4], %s264
        %s266 = sand.u32 %s135, 1
        %s267 = smul.addr %s266, 16
        %s268 = scalar_lea.vmem [#allocation8], %s267
        %s269 = smul.u32 4, %s27
        %s270 = smul.u32 4, %s27
        %v272 = vld [vmem:[%s233] sm:$0x3]
        %v273 = vld [vmem:[%s233 + $0x2] sm:$0x3]
        %v274 = vld [vmem:[%s233 + $0x4] sm:$0x3]
        %v275 = vld [vmem:[%s233 + $0x6] sm:$0x3]
        %v276 = vld [vmem:[#allocation5] sm:$0xf]
        %v277 = vld [vmem:[#allocation5 + $0x4] sm:$0xf]
        %v278 = vld [vmem:[%s3] sm:$0x1]
        %v280 = vperm.slane %v278, 0
        %283 = vst [vmem:[#allocation1] ss:$4 sm:$0xff] %v272
        %s285 = scalar_lea.vmem [#allocation1], 1
        %286 = vst [vmem:[%s285] ss:$4 sm:$0xff] %v273
        %s288 = scalar_lea.vmem [#allocation1], 2
        %289 = vst [vmem:[%s288] ss:$4 sm:$0xff] %v274
        %s291 = scalar_lea.vmem [#allocation1], 3
        %292 = vst [vmem:[%s291] ss:$4 sm:$0xff] %v275
        %v293 = vld.sshfl [vmem:[#allocation1] sm:$0xff pattern:$0x73625140]
        %v296 = vunpack.c.l.b16 %v276
        %v297 = vunpack.c.l.b16 %v277
        %v298 = vpack.c.b16 %v297, %v296
        %vm300 = vcmask 130048
        %v301 = vsel %vm300, %v293, 0
        %303 = vmatpush.bf16.msra.mxu0 0
        %304 = vmatpush.bf16.msra.mxu0 0
        %305 = vmatpush.bf16.msra.mxu0 0
        %306 = vmatpush.bf16.msra.mxu0 0
        %307 = vmatpush.bf16.msra.mxu0 0
        %308 = vmatpush.bf16.msra.mxu0 0
        %309 = vmatpush.bf16.msra.mxu0 0
        %310 = vmatpush.bf16.msra.mxu0 %v298
        %311 = vmatmul.bf16.gmra.mxu0 %v301
        %v312 = vpop.f32.mrf.mxu0
        %v313 = vadd.f32 %v280, %v312
        %v314 = vpop.f32.mrf.mxu0
        %v315 = vadd.f32 %v280, %v314
        %316 = vdwg.mxu0
        %v317 = vld [vmem:[#allocation7] sm:$0xf]
        %v318 = vld [vmem:[#allocation7 + $0x4] sm:$0xf]
        %319 = vst [vmem:[#allocation1] ss:$4 sm:$0xff] %v272
        %s320 = scalar_lea.vmem [#allocation1], 1
        %321 = vst [vmem:[%s320] ss:$4 sm:$0xff] %v273
        %s322 = scalar_lea.vmem [#allocation1], 2
        %323 = vst [vmem:[%s322] ss:$4 sm:$0xff] %v274
        %s324 = scalar_lea.vmem [#allocation1], 3
        %325 = vst [vmem:[%s324] ss:$4 sm:$0xff] %v275
        %v326 = vld.sshfl [vmem:[#allocation1] sm:$0xff pattern:$0x73625140]
        %v329 = vunpack.c.l.b16 %v317
        %v330 = vunpack.c.l.b16 %v318
        %v331 = vpack.c.b16 %v330, %v329
        %v333 = vsel %vm300, %v326, 0
        %335 = vmatpush.bf16.msra.mxu0 0
        %336 = vmatpush.bf16.msra.mxu0 0
        %337 = vmatpush.bf16.msra.mxu0 0
        %338 = vmatpush.bf16.msra.mxu0 0
        %339 = vmatpush.bf16.msra.mxu0 0
        %340 = vmatpush.bf16.msra.mxu0 0
        %341 = vmatpush.bf16.msra.mxu0 0
        %342 = vmatpush.bf16.msra.mxu0 %v331
        %343 = vmatmul.bf16.gmra.mxu0 %v333
        %v344 = vpop.f32.mrf.mxu0
        %v345 = vadd.f32 %v280, %v344
        %v346 = vpop.f32.mrf.mxu0
        %v347 = vadd.f32 %v280, %v346
        %348 = vdwg.mxu0
        %v351 = vrot.slane %v313, 4
        %v352 = vrot.slane %v315, 4
        %v355 = vpack.c.bf16 %v313, %v313
        %v356 = vpack.c.bf16 %v351, %v351
        %v357 = vpack.c.bf16 %v315, %v315
        %v358 = vpack.c.bf16 %v352, %v352
        %vm359 = vcmask 123904
        %360 = vst.msk [vmem:[%s268] sm:$0x3] %vm359, %v355
        %361 = vst.msk [vmem:[%s268 + $0x4] sm:$0x3] %vm359, %v356
        %362 = vst.msk [vmem:[%s268 + $0x8] sm:$0x3] %vm359, %v357
        %363 = vst.msk [vmem:[%s268 + $0xc] sm:$0x3] %vm359, %v358
        %v366 = vrot.slane %v345, 4
        %v367 = vrot.slane %v347, 4
        %v370 = vpack.c.bf16 %v345, %v345
        %v371 = vpack.c.bf16 %v366, %v366
        %v372 = vpack.c.bf16 %v347, %v347
        %v373 = vpack.c.bf16 %v367, %v367
        %s374 = scalar_lea.vmem %s268, 2 [#allocation8]
        %375 = vst.msk [vmem:[%s374] sm:$0x3] %vm359, %v370
        %376 = vst.msk [vmem:[%s374 + $0x4] sm:$0x3] %vm359, %v371
        %377 = vst.msk [vmem:[%s374 + $0x8] sm:$0x3] %vm359, %v372
        %378 = vst.msk [vmem:[%s374 + $0xc] sm:$0x3] %vm359, %v373
        %s379 = sand.u32 %s135, 1
        %s380 = scalar_lea.sflag [#allocation4], %s379
        %s381 = sand.u32 %s135, 1
        %s382 = smul.addr %s381, 16
        %s383 = scalar_lea.vmem [#allocation8], %s382
        // Predicated region
        $region49: #{tpu_custom_call.1} parent=35 // pred_check
          %p384 = pneg %p145
        $region50: #{tpu_custom_call.1} parent=35 // pred_check_branch
          %386 = sbr.rel (%p384) target = $region52
        $region51: #{tpu_custom_call.1} parent=35 // pred_region
          %s387 = smul.u32 4, %s27
          %389 = vsyncadd %s380, 0
          %s390 = smul.addr %s387, 2
          %s391 = smul.addr %s26, 8
          %s392 = sadd.s32 %s390, %s391
          %s393 = smul.addr %s392, 2
          %s394 = scalar_lea.hbm %s4, %s393
          %s395 = sshll.u32 %s383, 4
          %s396 = int_to_ptr.vmem [resolvable:$true] %s395
          %s397 = sshll.u32 %s394, 4
          %s398 = int_to_ptr.hbm [resolvable:$true] %s397
          %403 = dma.vmem_to_hbm [thread:$0]  %s396, 256, %s398, %s380, 32, 32, 2
        $region52: #{tpu_custom_call.1} parent=35 // pred_fallthru
          _
      $region36: #{tpu_custom_call.1} parent=5 // pred_fallthru
        _
      %p404 = scmp.le.s32.totalorder 2, %s17
      // Predicated region
      $region53: #{tpu_custom_call.1} parent=5 // pred_check
        %p405 = pneg %p404
      $region54: #{tpu_custom_call.1} parent=5 // pred_check_branch
        %407 = sbr.rel (%p405) target = $region56
      $region55: #{tpu_custom_call.1} parent=5 // pred_region
        %s408 = ssub.s32 %s17, 2
        // Predicated region
        $region57: #{tpu_custom_call.1} parent=55 // pred_check
          %p409 = pneg %p151
        $region58: #{tpu_custom_call.1} parent=55 // pred_check_branch
          %411 = sbr.rel (%p409) target = $region60
        $region59: #{tpu_custom_call.1} parent=55 // pred_region
          %s412 = sand.u32 %s136, 1
          %s413 = scalar_lea.sflag [#allocation4], %s412
          %s414 = sand.u32 %s136, 1
          %s415 = smul.addr %s414, 16
          %s416 = scalar_lea.vmem [#allocation8], %s415
          %418 = dma.done %s413, 256
        $region60: #{tpu_custom_call.1} parent=55 // pred_fallthru
          _
      $region56: #{tpu_custom_call.1} parent=5 // pred_fallthru
        _
    $region6: #{tpu_custom_call.1} parent=1 // loop_footer
      %s21 = sadd.s32 1, %s17
    $region7: #{tpu_custom_call.1} parent=1 // loop_footer_branch
      %16 = sbr.rel target = $region3
    $region8: #{tpu_custom_call.1} parent=1 // loop_exit
      _
    %419 = vsyncpa [#allocation3], 1
    %s420 = scalar_lea.sflag [#allocation3], 1
    %421 = vsyncpa %s420, 1
    %422 = vsyncpa [#allocation6], 1
    %423 = vsyncpa [#allocation4], 1
    %s424 = scalar_lea.sflag [#allocation4], 1
    %425 = vsyncpa %s424, 1

</llo_original>
